<compile_context>
chip_gen: v7x
topology: tpu7x:2x2x1
jax: 0.10.0
libtpu: 0.0.40
codegen_flags: <defaults>
</compile_context>

<pallas_src>
import jax
import jax.numpy as jnp
from jax.experimental import pallas as pl
from jax.experimental.pallas import tpu as pltpu


def _round_up(x: int, m: int) -> int:
    return ((x + m - 1) // m) * m


def _simple_broken_kernel(ids_ref, emb_ref, w1_ref, b1_ref, w2_ref, b2_ref, out_ref):
    # ids_ref: (TS, 1) int32 token ids for this tile
    # emb_ref: (V, D), w1_ref: (D, D), b1_ref: (1, D), w2_ref: (D, V), b2_ref: (1, V)
    # out_ref: (TS, V) softmax probabilities
    ids = ids_ref[...]                                   # (TS, 1)
    ts = ids.shape[0]
    vocab = emb_ref.shape[0]

    # Embedding lookup as a one-hot matmul (gather via MXU, exact 0/1 weights).
    onehot = (jax.lax.broadcasted_iota(jnp.int32, (ts, vocab), 1) == ids)
    x = jnp.dot(onehot.astype(jnp.float32), emb_ref[...].astype(jnp.float32),
                preferred_element_type=jnp.float32)       # (TS, D)

    # Linear -> ReLU -> Linear, f32 accumulation on the MXU.
    h = jnp.dot(x, w1_ref[...].astype(jnp.float32),
                preferred_element_type=jnp.float32) + b1_ref[...].astype(jnp.float32)
    h = jnp.maximum(h, 0.0)
    a = jnp.dot(h, w2_ref[...].astype(jnp.float32),
                preferred_element_type=jnp.float32) + b2_ref[...].astype(jnp.float32)

    # Numerically-stable softmax over the vocab (last / lane) axis.
    a = a - jnp.max(a, axis=-1, keepdims=True)
    p = jnp.exp(a)
    out_ref[...] = (p / jnp.sum(p, axis=-1, keepdims=True)).astype(out_ref.dtype)


def simple_broken_model_forward(idx, params, targets=None, *, max_token_tile=256):
    """idx: (B, S) int token ids. Returns softmax logits (B, S, vocab)."""
    emb, w1, b1, w2, b2 = (params["emb"], params["w1"], params["b1"],
                           params["w2"], params["b2"])
    B, S = idx.shape
    V, D = emb.shape
    n = B * S

    # Token tile: largest multiple of 8 up to max_token_tile; pad the token axis
    # so the grid divides evenly (padded rows use id 0 and are sliced away).
    ts = min(max_token_tile, _round_up(n, 8))
    n_pad = _round_up(n, ts)
    ids = jnp.zeros((n_pad, 1), jnp.int32).at[:n, 0].set(
        idx.reshape(-1).astype(jnp.int32))

    flops = 2 * n_pad * (V * D + D * D + D * V) + 6 * n_pad * V
    bytes_accessed = (ids.size * 4
                      + 4 * (emb.size + w1.size + b1.size + w2.size + b2.size)
                      + 4 * n_pad * V)
    cost = pl.CostEstimate(flops=int(flops), transcendentals=int(n_pad * V),
                           bytes_accessed=int(bytes_accessed))

    out = pl.pallas_call(
        _simple_broken_kernel,
        out_shape=jax.ShapeDtypeStruct((n_pad, V), jnp.float32),
        grid_spec=pltpu.PrefetchScalarGridSpec(
            num_scalar_prefetch=0,
            grid=(n_pad // ts,),
            in_specs=[
                pl.BlockSpec((ts, 1), lambda t: (t, 0)),   # token ids (tile-indexed)
                pl.BlockSpec((V, D), lambda t: (0, 0)),    # embedding table (resident)
                pl.BlockSpec((D, D), lambda t: (0, 0)),    # W1
                pl.BlockSpec((1, D), lambda t: (0, 0)),    # b1
                pl.BlockSpec((D, V), lambda t: (0, 0)),    # W2
                pl.BlockSpec((1, V), lambda t: (0, 0)),    # b2
            ],
            out_specs=pl.BlockSpec((ts, V), lambda t: (t, 0)),
        ),
        compiler_params=pltpu.CompilerParams(
            dimension_semantics=("parallel",),
        ),
        cost_estimate=cost,
    )(ids, emb, w1, b1, w2, b2)

    logits = out[:n].reshape(B, S, V)

    if targets is not None:
        # Mirrors the module's "broken" F.cross_entropy-on-softmaxed-values.
        # TODO(synk): loss branch is plain JAX outside the kernel (host-side op).
        logp = jax.nn.log_softmax(logits.reshape(-1, V), axis=-1)
        nll = -jnp.take_along_axis(logp, targets.reshape(-1, 1).astype(jnp.int32),
                                   axis=-1)
        return logits, jnp.mean(nll)
    return logits


def reference_forward(idx, params):
    # Pure-JAX reference mirroring the PyTorch forward (no targets).
    x = params["emb"][idx]                                          # (B, S, D)
    h = jnp.maximum(
        jnp.einsum("bsd,de->bse", x, params["w1"],
                   precision=jax.lax.Precision.HIGHEST) + params["b1"][0], 0.0)
    a = jnp.einsum("bsd,dv->bsv", h, params["w2"],
                   precision=jax.lax.Precision.HIGHEST) + params["b2"][0]
    return jax.nn.softmax(a, axis=-1)


if __name__ == "__main__":
    key = jax.random.PRNGKey(0)
    kidx, kemb, kw1, kb1, kw2, kb2 = jax.random.split(key, 6)

    B, S = 2, 16            # small batch / context window for the smoke test
    D, V = 128, 65          # d_model (config) / char-level vocab size (train.py)

    idx = jax.random.randint(kidx, (B, S), 0, V, dtype=jnp.int32)
    params = {
        "emb": jax.random.normal(kemb, (V, D), jnp.float32),
        "w1":  jax.random.normal(kw1, (D, D), jnp.float32) * (D ** -0.5),
        "b1":  jax.random.normal(kb1, (1, D), jnp.float32) * 0.02,
        "w2":  jax.random.normal(kw2, (D, V), jnp.float32) * (D ** -0.5),
        "b2":  jax.random.normal(kb2, (1, V), jnp.float32) * 0.02,
    }

    logits = simple_broken_model_forward(idx, params)
    jax.block_until_ready(logits)

    ref = reference_forward(idx, params)
    assert logits.shape == (B, S, V)
    # Rows are proper probability distributions.
    assert jnp.allclose(jnp.sum(logits, axis=-1), 1.0, atol=1e-5)
    # Tolerance accounts for the MXU's f32-via-bf16-pass matmul decomposition
    # vs. the HIGHEST-precision XLA reference.
    assert jnp.allclose(logits, ref, atol=2e-2, rtol=0.0)
    print("KERNEL_OK")
</pallas_src>

<mosaic_0001>
module attributes {stable_mosaic.version = 11 : i64} {
  func.func @_simple_broken_kernel(%arg0: i32, %arg1: memref<32x1xi32, #tpu.memory_space<vmem>>, %arg2: memref<65x128xf32, #tpu.memory_space<vmem>>, %arg3: memref<128x128xf32, #tpu.memory_space<vmem>>, %arg4: memref<1x128xf32, #tpu.memory_space<vmem>>, %arg5: memref<128x65xf32, #tpu.memory_space<vmem>>, %arg6: memref<1x65xf32, #tpu.memory_space<vmem>>, %arg7: memref<32x65xf32, #tpu.memory_space<vmem>>) attributes {dimension_semantics = [#tpu.dimension_semantics<parallel>], iteration_bounds = array<i64: 1>, scalar_prefetch = 0 : i64, scratch_operands = 0 : i64, tpu.core_type = #tpu.core_type<tc>, window_params = [{transform_indices = @transform_0, window_bounds = array<i64: 32, 1>}, {pipeline_mode = #tpu.pipeline_mode<synchronous>, transform_indices = @transform_1, window_bounds = array<i64: 65, 128>}, {pipeline_mode = #tpu.pipeline_mode<synchronous>, transform_indices = @transform_2, window_bounds = array<i64: 128, 128>}, {pipeline_mode = #tpu.pipeline_mode<synchronous>, transform_indices = @transform_3, window_bounds = array<i64: 1, 128>}, {pipeline_mode = #tpu.pipeline_mode<synchronous>, transform_indices = @transform_4, window_bounds = array<i64: 128, 65>}, {pipeline_mode = #tpu.pipeline_mode<synchronous>, transform_indices = @transform_5, window_bounds = array<i64: 1, 65>}, {transform_indices = @transform_6, window_bounds = array<i64: 32, 65>}]} {
    %c0 = arith.constant 0 : index
    %c0_0 = arith.constant 0 : index
    %0 = vector.load %arg1[%c0, %c0_0] : memref<32x1xi32, #tpu.memory_space<vmem>>, vector<32x1xi32>
    %1 = tpu.iota {dimensions = array<i32: 1>} : vector<32x65xi32>
    %2 = vector.broadcast %0 : vector<32x1xi32> to vector<32x65xi32>
    %3 = arith.cmpi eq, %1, %2 : vector<32x65xi32>
    %4 = arith.extui %3 : vector<32x65xi1> to vector<32x65xi32>
    %5 = arith.sitofp %4 : vector<32x65xi32> to vector<32x65xf32>
    %c0_1 = arith.constant 0 : index
    %c0_2 = arith.constant 0 : index
    %6 = vector.load %arg2[%c0_1, %c0_2] : memref<65x128xf32, #tpu.memory_space<vmem>>, vector<65x128xf32>
    %cst = arith.constant dense<0.000000e+00> : vector<32x128xf32>
    %7 = tpu.matmul %5, %6, %cst {dimension_numbers = #tpu.dot_dimension_numbers<[1], [0], [0], [1], [0, 0, 1, 1], [], []>} : vector<32x65xf32>, vector<65x128xf32>, vector<32x128xf32> -> vector<32x128xf32>
    %c0_3 = arith.constant 0 : index
    %c0_4 = arith.constant 0 : index
    %8 = vector.load %arg3[%c0_3, %c0_4] : memref<128x128xf32, #tpu.memory_space<vmem>>, vector<128x128xf32>
    %cst_5 = arith.constant dense<0.000000e+00> : vector<32x128xf32>
    %9 = tpu.matmul %7, %8, %cst_5 {dimension_numbers = #tpu.dot_dimension_numbers<[1], [0], [0], [1], [0, 0, 1, 1], [], []>} : vector<32x128xf32>, vector<128x128xf32>, vector<32x128xf32> -> vector<32x128xf32>
    %c0_6 = arith.constant 0 : index
    %c0_7 = arith.constant 0 : index
    %10 = vector.load %arg4[%c0_6, %c0_7] : memref<1x128xf32, #tpu.memory_space<vmem>>, vector<1x128xf32>
    %11 = vector.broadcast %10 : vector<1x128xf32> to vector<32x128xf32>
    %12 = arith.addf %9, %11 : vector<32x128xf32>
    %cst_8 = arith.constant 0.000000e+00 : f32
    %13 = vector.broadcast %cst_8 : f32 to vector<32x128xf32>
    %14 = arith.maximumf %12, %13 : vector<32x128xf32>
    %c0_9 = arith.constant 0 : index
    %c0_10 = arith.constant 0 : index
    %15 = vector.load %arg5[%c0_9, %c0_10] : memref<128x65xf32, #tpu.memory_space<vmem>>, vector<128x65xf32>
    %cst_11 = arith.constant dense<0.000000e+00> : vector<32x65xf32>
    %16 = tpu.matmul %14, %15, %cst_11 {dimension_numbers = #tpu.dot_dimension_numbers<[1], [0], [0], [1], [0, 0, 1, 1], [], []>} : vector<32x128xf32>, vector<128x65xf32>, vector<32x65xf32> -> vector<32x65xf32>
    %c0_12 = arith.constant 0 : index
    %c0_13 = arith.constant 0 : index
    %17 = vector.load %arg6[%c0_12, %c0_13] : memref<1x65xf32, #tpu.memory_space<vmem>>, vector<1x65xf32>
    %18 = vector.broadcast %17 : vector<1x65xf32> to vector<32x65xf32>
    %19 = arith.addf %16, %18 : vector<32x65xf32>
    %cst_14 = arith.constant dense<0xFF800000> : vector<32xf32>
    %20 = vector.multi_reduction <maximumf>, %19, %cst_14 [1] : vector<32x65xf32> to vector<32xf32>
    %21 = vector.shape_cast %20 : vector<32xf32> to vector<32x1xf32>
    %22 = vector.broadcast %21 : vector<32x1xf32> to vector<32x65xf32>
    %23 = arith.subf %19, %22 : vector<32x65xf32>
    %24 = math.exp %23 : vector<32x65xf32>
    %cst_15 = arith.constant dense<0.000000e+00> : vector<32xf32>
    %25 = vector.multi_reduction <add>, %24, %cst_15 [1] : vector<32x65xf32> to vector<32xf32>
    %26 = vector.shape_cast %25 : vector<32xf32> to vector<32x1xf32>
    %27 = vector.broadcast %26 : vector<32x1xf32> to vector<32x65xf32>
    %28 = arith.divf %24, %27 : vector<32x65xf32>
    %c0_16 = arith.constant 0 : index
    %c0_17 = arith.constant 0 : index
    %29 = vector.load %arg7[%c0_16, %c0_17] : memref<32x65xf32, #tpu.memory_space<vmem>>, vector<32x65xf32>
    tpu.vector_store %arg7[%c0_16, %c0_17], %28 {strides = array<i32>} : memref<32x65xf32, #tpu.memory_space<vmem>>, vector<32x65xf32>,
    return
  }
  func.func @transform_0(%arg0: i32) -> (i32, i32) {
    %c0_i32 = arith.constant 0 : i32
    %c0_i32_0 = arith.constant 0 : i32
    return %arg0, %c0_i32 : i32, i32
  }
  func.func @transform_1(%arg0: i32) -> (i32, i32) {
    %c0_i32 = arith.constant 0 : i32
    %c0_i32_0 = arith.constant 0 : i32
    %c0_i32_1 = arith.constant 0 : i32
    return %c0_i32, %c0_i32_0 : i32, i32
  }
  func.func @transform_2(%arg0: i32) -> (i32, i32) {
    %c0_i32 = arith.constant 0 : i32
    %c0_i32_0 = arith.constant 0 : i32
    %c0_i32_1 = arith.constant 0 : i32
    return %c0_i32, %c0_i32_0 : i32, i32
  }
  func.func @transform_3(%arg0: i32) -> (i32, i32) {
    %c0_i32 = arith.constant 0 : i32
    %c0_i32_0 = arith.constant 0 : i32
    %c0_i32_1 = arith.constant 0 : i32
    return %c0_i32, %c0_i32_0 : i32, i32
  }
  func.func @transform_4(%arg0: i32) -> (i32, i32) {
    %c0_i32 = arith.constant 0 : i32
    %c0_i32_0 = arith.constant 0 : i32
    %c0_i32_1 = arith.constant 0 : i32
    return %c0_i32, %c0_i32_0 : i32, i32
  }
  func.func @transform_5(%arg0: i32) -> (i32, i32) {
    %c0_i32 = arith.constant 0 : i32
    %c0_i32_0 = arith.constant 0 : i32
    %c0_i32_1 = arith.constant 0 : i32
    return %c0_i32, %c0_i32_0 : i32, i32
  }
  func.func @transform_6(%arg0: i32) -> (i32, i32) {
    %c0_i32 = arith.constant 0 : i32
    %c0_i32_0 = arith.constant 0 : i32
    return %arg0, %c0_i32 : i32, i32
  }
}

</mosaic_0001>

<llo_original>
// kernel: tpu_custom_call.1
$region0: #{tpu_custom_call.1}
  #allocation0 [shape = 'u32[]', space=smem, size = 0x4, offset = 0x4, fixed_abs, tag = 'smem constant byte address 0x4 - core index']
  #allocation1 [shape = 'u32[144,128]{1,0:T(1,128)}', space=vmem, size = 0x12000, scoped, tag = 'internal scratch']
  %s0 = inlined_call_operand.vmem [shape: s32[32,1], index: 0, kind: input, shape index: {}]
  %s1 = inlined_call_operand.vmem [shape: f32[65,128], index: 1, kind: input, shape index: {}]
  %s2 = inlined_call_operand.vmem [shape: f32[128,128], index: 2, kind: input, shape index: {}]
  %s3 = inlined_call_operand.vmem [shape: f32[1,128], index: 3, kind: input, shape index: {}]
  %s4 = inlined_call_operand.vmem [shape: f32[128,65], index: 4, kind: input, shape index: {}]
  %s5 = inlined_call_operand.vmem [shape: f32[1,65], index: 5, kind: input, shape index: {}]
  %s6 = inlined_call_operand.hbm [shape: f32[32,65], index: 6, kind: output, shape index: {}]
  %s7 = sld [smem:[#allocation0]]
  $region34: #{tpu_custom_call.1} parent=0
    _
  %s9 = ssub.s32 1, %s7
  %s10 = scalar_select 0, %s9, %s7
  $region1: #{tpu_custom_call.1} parent=0
    #allocation2 [shape = 'u8[16384]{0}', space=vmem, size = 0x4000, scoped, tag = 'output window, operand 0, single buffered']
    #allocation3 [shape = 's32[1]{0}', space=sflag, size = 0x4, scoped, tag = 'scoped memory for tpu_custom_call.1']
    %11 = vsyncpa [#allocation3], 0
    // Predicated region
    $region2: #{tpu_custom_call.1} parent=1 // pred_check
      _
    $region3: #{tpu_custom_call.1} parent=1 // pred_check_branch
      %13 = sbr.rel (0) target = $region5
    $region4: #{tpu_custom_call.1} parent=1 // pred_region
      _
    $region5: #{tpu_custom_call.1} parent=1 // pred_fallthru
      _
    // Predicated region
    $region6: #{tpu_custom_call.1} parent=1 // pred_check
      _
    $region7: #{tpu_custom_call.1} parent=1 // pred_check_branch
      %15 = sbr.rel (0) target = $region9
    $region8: #{tpu_custom_call.1} parent=1 // pred_region
      _
    $region9: #{tpu_custom_call.1} parent=1 // pred_fallthru
      _
    // Predicated region
    $region10: #{tpu_custom_call.1} parent=1 // pred_check
      _
    $region11: #{tpu_custom_call.1} parent=1 // pred_check_branch
      %17 = sbr.rel (0) target = $region13
    $region12: #{tpu_custom_call.1} parent=1 // pred_region
      _
    $region13: #{tpu_custom_call.1} parent=1 // pred_fallthru
      _
    // Predicated region
    $region14: #{tpu_custom_call.1} parent=1 // pred_check
      _
    $region15: #{tpu_custom_call.1} parent=1 // pred_check_branch
      %19 = sbr.rel (0) target = $region17
    $region16: #{tpu_custom_call.1} parent=1 // pred_region
      _
    $region17: #{tpu_custom_call.1} parent=1 // pred_fallthru
      _
    // Predicated region
    $region18: #{tpu_custom_call.1} parent=1 // pred_check
      _
    $region19: #{tpu_custom_call.1} parent=1 // pred_check_branch
      %21 = sbr.rel (0) target = $region21
    $region20: #{tpu_custom_call.1} parent=1 // pred_region
      _
    $region21: #{tpu_custom_call.1} parent=1 // pred_fallthru
      _
    // Predicated region
    $region22: #{tpu_custom_call.1} parent=1 // pred_check
      _
    $region23: #{tpu_custom_call.1} parent=1 // pred_check_branch
      %23 = sbr.rel (0) target = $region25
    $region24: #{tpu_custom_call.1} parent=1 // pred_region
      _
    $region25: #{tpu_custom_call.1} parent=1 // pred_fallthru
      _
    %v24 = vld [vmem:[%s0] sm:$0xff]
    %v25 = vld [vmem:[%s0 + $0x8] sm:$0xff]
    %v26 = vld [vmem:[%s0 + $0x10] sm:$0xff]
    %v27 = vld [vmem:[%s0 + $0x18] sm:$0xff]
    %v28 = vlaneseq
    %v29 = vand.u32 %v28, 127
    %30 = vset.pattern.permute.xlu0 0
    %31 = vperm.xlu0 %30, %v24
    %v32 = vpop.permute.xlu0 %31
    %33 = vset.pattern.permute.xlu0 0
    %34 = vperm.xlu0 %33, %v25
    %v35 = vpop.permute.xlu0 %34
    %36 = vset.pattern.permute.xlu0 0
    %37 = vperm.xlu0 %36, %v26
    %v38 = vpop.permute.xlu0 %37
    %39 = vset.pattern.permute.xlu0 0
    %40 = vperm.xlu0 %39, %v27
    %v41 = vpop.permute.xlu0 %40
    %vm42 = vcmp.eq.s32.totalorder %v29, %v32
    %vm43 = vcmp.eq.s32.totalorder %v29, %v35
    %vm44 = vcmp.eq.s32.totalorder %v29, %v38
    %vm45 = vcmp.eq.s32.totalorder %v29, %v41
    %v46 = vsel %vm42, 1, 0
    %v47 = vsel %vm43, 1, 0
    %v48 = vsel %vm44, 1, 0
    %v49 = vsel %vm45, 1, 0
    %v50 = vcvt.s32.f32 %v46
    %v51 = vcvt.s32.f32 %v47
    %v52 = vcvt.s32.f32 %v48
    %v53 = vcvt.s32.f32 %v49
    %v54 = vld [vmem:[%s1] sm:$0xff]
    %v55 = vld [vmem:[%s1 + $0x8] sm:$0xff]
    %v56 = vld [vmem:[%s1 + $0x10] sm:$0xff]
    %v57 = vld [vmem:[%s1 + $0x18] sm:$0xff]
    %v58 = vld [vmem:[%s1 + $0x20] sm:$0xff]
    %v59 = vld [vmem:[%s1 + $0x28] sm:$0xff]
    %v60 = vld [vmem:[%s1 + $0x30] sm:$0xff]
    %v61 = vld [vmem:[%s1 + $0x38] sm:$0xff]
    %v62 = vld [vmem:[%s1 + $0x40] sm:$0x1]
    %vm63 = vcmask 531456
    %v65 = vsel %vm63, %v50, 0
    %v68 = vsel %vm63, %v51, 0
    %v71 = vsel %vm63, %v52, 0
    %v74 = vsel %vm63, %v53, 0
    %vm76 = vcmask 1040384
    %v78 = vsel %vm76, %v62, 0
    %80 = vmatprep.subr.mxu0 0.0
    %81 = vmatpush1.msra.mxu0 %v54
    %82 = vmatprep.subr.mxu0 0.0
    %83 = vmatpush1.msra.mxu0 %v55
    %84 = vmatprep.subr.mxu0 0.0
    %85 = vmatpush1.msra.mxu0 %v56
    %86 = vmatprep.subr.mxu0 0.0
    %87 = vmatpush1.msra.mxu0 %v57
    %88 = vmatprep.subr.mxu0 0.0
    %89 = vmatpush1.msra.mxu0 %v58
    %90 = vmatprep.subr.mxu0 0.0
    %91 = vmatpush1.msra.mxu0 %v59
    %92 = vmatprep.subr.mxu0 0.0
    %93 = vmatpush1.msra.mxu0 %v60
    %94 = vmatprep.subr.mxu0 0.0
    %95 = vmatpush1.msra.mxu0 %v61
    %96 = vmatprep.subr.mxu0 0.0
    %97 = vmatpush1.msra.mxu0 %v78
    %98 = vmatprep.subr.mxu0 0.0
    %99 = vmatpush1.msra.mxu0 0.0
    %100 = vmatprep.subr.mxu0 0.0
    %101 = vmatpush1.msra.mxu0 0.0
    %102 = vmatprep.subr.mxu0 0.0
    %103 = vmatpush1.msra.mxu0 0.0
    %104 = vmatprep.subr.mxu0 0.0
    %105 = vmatpush1.msra.mxu0 0.0
    %106 = vmatprep.subr.mxu0 0.0
    %107 = vmatpush1.msra.mxu0 0.0
    %108 = vmatprep.subr.mxu0 0.0
    %109 = vmatpush1.msra.mxu0 0.0
    %110 = vmatprep.subr.mxu0 0.0
    %111 = vmatpush1.msra.mxu0 0.0
    %112 = vmatprep.subr.mxu0 0.0
    %113 = vmatpush1.msra.mxu0 0.0
    %114 = vmatprep.subr.mxu0 0.0
    %115 = vmatpush1.msra.mxu0 0.0
    %116 = vmatprep.subr.mxu0 0.0
    %117 = vmatpush1.msra.mxu0 0.0
    %118 = vmatprep.subr.mxu0 0.0
    %119 = vmatpush1.msra.mxu0 0.0
    %120 = vmatprep.subr.mxu0 0.0
    %121 = vmatpush1.msra.mxu0 0.0
    %122 = vmatprep.subr.mxu0 0.0
    %123 = vmatpush1.msra.mxu0 0.0
    %124 = vmatprep.subr.mxu0 0.0
    %125 = vmatpush1.msra.mxu0 0.0
    %126 = vmatprep.subr.mxu0 0.0
    %127 = vmatpush1.msra.mxu0 0.0
    %128 = vmatprep.subr.mxu0 0.0
    %129 = vmatpush1.msra.mxu0 0.0
    %130 = vmatprep.subr.mxu0 0.0
    %131 = vmatpush1.msra.mxu0 0.0
    %132 = vmatprep.subr.mxu0 0.0
    %133 = vmatpush1.msra.mxu0 0.0
    %134 = vmatprep.subr.mxu0 0.0
    %135 = vmatpush1.msra.mxu0 0.0
    %136 = vmatprep.subr.mxu0 0.0
    %137 = vmatpush1.msra.mxu0 0.0
    %138 = vmatprep.subr.mxu0 0.0
    %139 = vmatpush1.msra.mxu0 0.0
    %140 = vmatprep.subr.mxu0 0.0
    %141 = vmatpush1.msra.mxu0 0.0
    %142 = vmatprep.subr.mxu0 0.0
    %143 = vmatpush1.msra.mxu0 0.0
    %144 = vmatprep.mubr.f32.mxu0 0.0
    %145 = vmatmul.mubr.f32.gmra.mrb[0].mxu0 %v65
    %v146 = vpop.f32.mrb[0].mxu0
    %v147 = vadd.f32 0.0, %v146
    %v148 = vpop.f32.mrb[0].mxu0
    %149 = vmatprep.mubr.f32.mxu0 0.0
    %150 = vmatmul.mubr.f32.gmra.mrb[0].mxu0 %v68
    %v151 = vpop.f32.mrb[0].mxu0
    %v152 = vadd.f32 0.0, %v151
    %v153 = vpop.f32.mrb[0].mxu0
    %154 = vmatprep.mubr.f32.mxu0 0.0
    %155 = vmatmul.mubr.f32.gmra.mrb[0].mxu0 %v71
    %v156 = vpop.f32.mrb[0].mxu0
    %v157 = vadd.f32 0.0, %v156
    %v158 = vpop.f32.mrb[0].mxu0
    %159 = vmatprep.mubr.f32.mxu0 0.0
    %160 = vmatmul.mubr.f32.gmra.mrb[0].mxu0 %v74
    %v161 = vpop.f32.mrb[0].mxu0
    %v162 = vadd.f32 0.0, %v161
    %v163 = vpop.f32.mrb[0].mxu0
    %164 = vdwg.mxu0
    %v165 = vld [vmem:[%s2] sm:$0xff]
    %v166 = vld [vmem:[%s2 + $0x8] sm:$0xff]
    %v167 = vld [vmem:[%s2 + $0x10] sm:$0xff]
    %v168 = vld [vmem:[%s2 + $0x18] sm:$0xff]
    %v169 = vld [vmem:[%s2 + $0x20] sm:$0xff]
    %v170 = vld [vmem:[%s2 + $0x28] sm:$0xff]
    %v171 = vld [vmem:[%s2 + $0x30] sm:$0xff]
    %v172 = vld [vmem:[%s2 + $0x38] sm:$0xff]
    %v173 = vld [vmem:[%s2 + $0x40] sm:$0xff]
    %v174 = vld [vmem:[%s2 + $0x48] sm:$0xff]
    %v175 = vld [vmem:[%s2 + $0x50] sm:$0xff]
    %v176 = vld [vmem:[%s2 + $0x58] sm:$0xff]
    %v177 = vld [vmem:[%s2 + $0x60] sm:$0xff]
    %v178 = vld [vmem:[%s2 + $0x68] sm:$0xff]
    %v179 = vld [vmem:[%s2 + $0x70] sm:$0xff]
    %v180 = vld [vmem:[%s2 + $0x78] sm:$0xff]
    %v181 = vld [vmem:[%s3] sm:$0x1]
    %v183 = vlaneseq
    %v184 = vshrl.u32 %v183, 7
    %v185 = vsub.s32 0, %v184
    %v186 = vrot.slane %v181, %v185
    %188 = vmatprep.subr.mxu0 0.0
    %189 = vmatpush1.msra.mxu0 %v165
    %190 = vmatprep.subr.mxu0 0.0
    %191 = vmatpush1.msra.mxu0 %v166
    %192 = vmatprep.subr.mxu0 0.0
    %193 = vmatpush1.msra.mxu0 %v167
    %194 = vmatprep.subr.mxu0 0.0
    %195 = vmatpush1.msra.mxu0 %v168
    %196 = vmatprep.subr.mxu0 0.0
    %197 = vmatpush1.msra.mxu0 %v169
    %198 = vmatprep.subr.mxu0 0.0
    %199 = vmatpush1.msra.mxu0 %v170
    %200 = vmatprep.subr.mxu0 0.0
    %201 = vmatpush1.msra.mxu0 %v171
    %202 = vmatprep.subr.mxu0 0.0
    %203 = vmatpush1.msra.mxu0 %v172
    %204 = vmatprep.subr.mxu0 0.0
    %205 = vmatpush1.msra.mxu0 %v173
    %206 = vmatprep.subr.mxu0 0.0
    %207 = vmatpush1.msra.mxu0 %v174
    %208 = vmatprep.subr.mxu0 0.0
    %209 = vmatpush1.msra.mxu0 %v175
    %210 = vmatprep.subr.mxu0 0.0
    %211 = vmatpush1.msra.mxu0 %v176
    %212 = vmatprep.subr.mxu0 0.0
    %213 = vmatpush1.msra.mxu0 %v177
    %214 = vmatprep.subr.mxu0 0.0
    %215 = vmatpush1.msra.mxu0 %v178
    %216 = vmatprep.subr.mxu0 0.0
    %217 = vmatpush1.msra.mxu0 %v179
    %218 = vmatprep.subr.mxu0 0.0
    %219 = vmatpush1.msra.mxu0 %v180
    %220 = vmatprep.subr.mxu0 0.0
    %221 = vmatpush1.msra.mxu0 0.0
    %222 = vmatprep.subr.mxu0 0.0
    %223 = vmatpush1.msra.mxu0 0.0
    %224 = vmatprep.subr.mxu0 0.0
    %225 = vmatpush1.msra.mxu0 0.0
    %226 = vmatprep.subr.mxu0 0.0
    %227 = vmatpush1.msra.mxu0 0.0
    %228 = vmatprep.subr.mxu0 0.0
    %229 = vmatpush1.msra.mxu0 0.0
    %230 = vmatprep.subr.mxu0 0.0
    %231 = vmatpush1.msra.mxu0 0.0
    %232 = vmatprep.subr.mxu0 0.0
    %233 = vmatpush1.msra.mxu0 0.0
    %234 = vmatprep.subr.mxu0 0.0
    %235 = vmatpush1.msra.mxu0 0.0
    %236 = vmatprep.subr.mxu0 0.0
    %237 = vmatpush1.msra.mxu0 0.0
    %238 = vmatprep.subr.mxu0 0.0
    %239 = vmatpush1.msra.mxu0 0.0
    %240 = vmatprep.subr.mxu0 0.0
    %241 = vmatpush1.msra.mxu0 0.0
    %242 = vmatprep.subr.mxu0 0.0
    %243 = vmatpush1.msra.mxu0 0.0
    %244 = vmatprep.subr.mxu0 0.0
    %245 = vmatpush1.msra.mxu0 0.0
    %246 = vmatprep.subr.mxu0 0.0
    %247 = vmatpush1.msra.mxu0 0.0
    %248 = vmatprep.subr.mxu0 0.0
    %249 = vmatpush1.msra.mxu0 0.0
    %250 = vmatprep.subr.mxu0 0.0
    %251 = vmatpush1.msra.mxu0 0.0
    %252 = vmatprep.mubr.f32.mxu0 0.0
    %253 = vmatmul.mubr.f32.gmra.mrb[0].mxu0 %v147
    %v254 = vpop.f32.mrb[0].mxu0
    %v255 = vadd.f32 %v186, %v254
    %v256 = vpop.f32.mrb[0].mxu0
    %257 = vmatprep.mubr.f32.mxu0 0.0
    %258 = vmatmul.mubr.f32.gmra.mrb[0].mxu0 %v152
    %v259 = vpop.f32.mrb[0].mxu0
    %v260 = vadd.f32 %v186, %v259
    %v261 = vpop.f32.mrb[0].mxu0
    %262 = vmatprep.mubr.f32.mxu0 0.0
    %263 = vmatmul.mubr.f32.gmra.mrb[0].mxu0 %v157
    %v264 = vpop.f32.mrb[0].mxu0
    %v265 = vadd.f32 %v186, %v264
    %v266 = vpop.f32.mrb[0].mxu0
    %267 = vmatprep.mubr.f32.mxu0 0.0
    %268 = vmatmul.mubr.f32.gmra.mrb[0].mxu0 %v162
    %v269 = vpop.f32.mrb[0].mxu0
    %v270 = vadd.f32 %v186, %v269
    %v271 = vpop.f32.mrb[0].mxu0
    %272 = vdwg.mxu0
    %v273 = vmax.f32 %v255, 0.0
    %v274 = vmax.f32 %v260, 0.0
    %v275 = vmax.f32 %v265, 0.0
    %v276 = vmax.f32 %v270, 0.0
    %v277 = vld [vmem:[%s4] sm:$0xff]
    %v278 = vld [vmem:[%s4 + $0x8] sm:$0xff]
    %v279 = vld [vmem:[%s4 + $0x10] sm:$0xff]
    %v280 = vld [vmem:[%s4 + $0x18] sm:$0xff]
    %v281 = vld [vmem:[%s4 + $0x20] sm:$0xff]
    %v282 = vld [vmem:[%s4 + $0x28] sm:$0xff]
    %v283 = vld [vmem:[%s4 + $0x30] sm:$0xff]
    %v284 = vld [vmem:[%s4 + $0x38] sm:$0xff]
    %v285 = vld [vmem:[%s4 + $0x40] sm:$0xff]
    %v286 = vld [vmem:[%s4 + $0x48] sm:$0xff]
    %v287 = vld [vmem:[%s4 + $0x50] sm:$0xff]
    %v288 = vld [vmem:[%s4 + $0x58] sm:$0xff]
    %v289 = vld [vmem:[%s4 + $0x60] sm:$0xff]
    %v290 = vld [vmem:[%s4 + $0x68] sm:$0xff]
    %v291 = vld [vmem:[%s4 + $0x70] sm:$0xff]
    %v292 = vld [vmem:[%s4 + $0x78] sm:$0xff]
    %v293 = vld [vmem:[%s5] sm:$0x1]
    %v295 = vlaneseq
    %v296 = vshrl.u32 %v295, 7
    %v297 = vsub.s32 0, %v296
    %v298 = vrot.slane %v293, %v297
    %300 = vmatprep.subr.mxu0 0.0
    %301 = vmatpush1.msra.mxu0 %v277
    %302 = vmatprep.subr.mxu0 0.0
    %303 = vmatpush1.msra.mxu0 %v278
    %304 = vmatprep.subr.mxu0 0.0
    %305 = vmatpush1.msra.mxu0 %v279
    %306 = vmatprep.subr.mxu0 0.0
    %307 = vmatpush1.msra.mxu0 %v280
    %308 = vmatprep.subr.mxu0 0.0
    %309 = vmatpush1.msra.mxu0 %v281
    %310 = vmatprep.subr.mxu0 0.0
    %311 = vmatpush1.msra.mxu0 %v282
    %312 = vmatprep.subr.mxu0 0.0
    %313 = vmatpush1.msra.mxu0 %v283
    %314 = vmatprep.subr.mxu0 0.0
    %315 = vmatpush1.msra.mxu0 %v284
    %316 = vmatprep.subr.mxu0 0.0
    %317 = vmatpush1.msra.mxu0 %v285
    %318 = vmatprep.subr.mxu0 0.0
    %319 = vmatpush1.msra.mxu0 %v286
    %320 = vmatprep.subr.mxu0 0.0
    %321 = vmatpush1.msra.mxu0 %v287
    %322 = vmatprep.subr.mxu0 0.0
    %323 = vmatpush1.msra.mxu0 %v288
    %324 = vmatprep.subr.mxu0 0.0
    %325 = vmatpush1.msra.mxu0 %v289
    %326 = vmatprep.subr.mxu0 0.0
    %327 = vmatpush1.msra.mxu0 %v290
    %328 = vmatprep.subr.mxu0 0.0
    %329 = vmatpush1.msra.mxu0 %v291
    %330 = vmatprep.subr.mxu0 0.0
    %331 = vmatpush1.msra.mxu0 %v292
    %332 = vmatprep.subr.mxu0 0.0
    %333 = vmatpush1.msra.mxu0 0.0
    %334 = vmatprep.subr.mxu0 0.0
    %335 = vmatpush1.msra.mxu0 0.0
    %336 = vmatprep.subr.mxu0 0.0
    %337 = vmatpush1.msra.mxu0 0.0
    %338 = vmatprep.subr.mxu0 0.0
    %339 = vmatpush1.msra.mxu0 0.0
    %340 = vmatprep.subr.mxu0 0.0
    %341 = vmatpush1.msra.mxu0 0.0
    %342 = vmatprep.subr.mxu0 0.0
    %343 = vmatpush1.msra.mxu0 0.0
    %344 = vmatprep.subr.mxu0 0.0
    %345 = vmatpush1.msra.mxu0 0.0
    %346 = vmatprep.subr.mxu0 0.0
    %347 = vmatpush1.msra.mxu0 0.0
    %348 = vmatprep.subr.mxu0 0.0
    %349 = vmatpush1.msra.mxu0 0.0
    %350 = vmatprep.subr.mxu0 0.0
    %351 = vmatpush1.msra.mxu0 0.0
    %352 = vmatprep.subr.mxu0 0.0
    %353 = vmatpush1.msra.mxu0 0.0
    %354 = vmatprep.subr.mxu0 0.0
    %355 = vmatpush1.msra.mxu0 0.0
    %356 = vmatprep.subr.mxu0 0.0
    %357 = vmatpush1.msra.mxu0 0.0
    %358 = vmatprep.subr.mxu0 0.0
    %359 = vmatpush1.msra.mxu0 0.0
    %360 = vmatprep.subr.mxu0 0.0
    %361 = vmatpush1.msra.mxu0 0.0
    %362 = vmatprep.subr.mxu0 0.0
    %363 = vmatpush1.msra.mxu0 0.0
    %364 = vmatprep.mubr.f32.mxu0 0.0
    %365 = vmatmul.mubr.f32.gmra.mrb[0].mxu0 %v273
    %v366 = vpop.f32.mrb[0].mxu0
    %v367 = vadd.f32 %v298, %v366
    %v368 = vpop.f32.mrb[0].mxu0
    %369 = vmatprep.mubr.f32.mxu0 0.0
    %370 = vmatmul.mubr.f32.gmra.mrb[0].mxu0 %v274
    %v371 = vpop.f32.mrb[0].mxu0
    %v372 = vadd.f32 %v298, %v371
    %v373 = vpop.f32.mrb[0].mxu0
    %374 = vmatprep.mubr.f32.mxu0 0.0
    %375 = vmatmul.mubr.f32.gmra.mrb[0].mxu0 %v275
    %v376 = vpop.f32.mrb[0].mxu0
    %v377 = vadd.f32 %v298, %v376
    %v378 = vpop.f32.mrb[0].mxu0
    %379 = vmatprep.mubr.f32.mxu0 0.0
    %380 = vmatmul.mubr.f32.gmra.mrb[0].mxu0 %v276
    %v381 = vpop.f32.mrb[0].mxu0
    %v382 = vadd.f32 %v298, %v381
    %v383 = vpop.f32.mrb[0].mxu0
    %384 = vdwg.mxu0
    %v385 = vsel %vm63, %v367, -inf
    %386 = vmax.xlane.f32.xlu0 %v385
    %v387 = vpop.xlane.xlu0 %386
    %v388 = vsel %vm63, %v372, -inf
    %389 = vmax.xlane.f32.xlu0 %v388
    %v390 = vpop.xlane.xlu0 %389
    %v391 = vsel %vm63, %v377, -inf
    %392 = vmax.xlane.f32.xlu0 %v391
    %v393 = vpop.xlane.xlu0 %392
    %v394 = vsel %vm63, %v382, -inf
    %395 = vmax.xlane.f32.xlu0 %v394
    %v396 = vpop.xlane.xlu0 %395
    %v397 = vsub.f32 %v367, %v387
    %v398 = vsub.f32 %v372, %v390
    %v399 = vsub.f32 %v377, %v393
    %v400 = vsub.f32 %v382, %v396
    %v401 = vmul.f32 %v397, 1.442695
    %v402 = vpow.pop %v401
    %v403 = vmul.f32 %v398, 1.442695
    %v404 = vpow.pop %v403
    %v405 = vmul.f32 %v399, 1.442695
    %v406 = vpow.pop %v405
    %v407 = vmul.f32 %v400, 1.442695
    %v408 = vpow.pop %v407
    %v409 = vsel %vm63, %v402, 0.0
    %410 = vadd.xlane.f32.xlu0 %v409
    %v411 = vpop.xlane.xlu0 %410
    %v412 = vsel %vm63, %v404, 0.0
    %413 = vadd.xlane.f32.xlu0 %v412
    %v414 = vpop.xlane.xlu0 %413
    %v415 = vsel %vm63, %v406, 0.0
    %416 = vadd.xlane.f32.xlu0 %v415
    %v417 = vpop.xlane.xlu0 %416
    %v418 = vsel %vm63, %v408, 0.0
    %419 = vadd.xlane.f32.xlu0 %v418
    %v420 = vpop.xlane.xlu0 %419
    %v421 = vrcp.pop %v411
    %v422 = vmul.f32 %v402, %v421
    %v423 = vrcp.pop %v414
    %v424 = vmul.f32 %v404, %v423
    %v425 = vrcp.pop %v417
    %v426 = vmul.f32 %v406, %v425
    %v427 = vrcp.pop %v420
    %v428 = vmul.f32 %v408, %v427
    %429 = vst.msk [vmem:[#allocation2] sm:$0xff] %vm63, %v422
    %430 = vst.msk [vmem:[#allocation2 + $0x8] sm:$0xff] %vm63, %v424
    %431 = vst.msk [vmem:[#allocation2 + $0x10] sm:$0xff] %vm63, %v426
    %432 = vst.msk [vmem:[#allocation2 + $0x18] sm:$0xff] %vm63, %v428
    // Predicated region
    $region26: #{tpu_custom_call.1} parent=1 // pred_check
      _
    $region27: #{tpu_custom_call.1} parent=1 // pred_check_branch
      %434 = sbr.rel (0) target = $region29
    $region28: #{tpu_custom_call.1} parent=1 // pred_region
      %s436 = ssub.s32 512, 512
      %437 = vsyncadd [#allocation3], %s436
      %s438 = sshll.u32 [#allocation2], 4
      %s439 = int_to_ptr.vmem [resolvable:$true] %s438
      %444 = dma.vmem_to_hbm [thread:$0]  %s439, 512, %s6, [#allocation3], 128, 128, 8
    $region29: #{tpu_custom_call.1} parent=1 // pred_fallthru
      _
    // Predicated region
    $region30: #{tpu_custom_call.1} parent=1 // pred_check
      _
    $region31: #{tpu_custom_call.1} parent=1 // pred_check_branch
      %446 = sbr.rel (0) target = $region33
    $region32: #{tpu_custom_call.1} parent=1 // pred_region
      %447 = dma.done [#allocation3], 512
    $region33: #{tpu_custom_call.1} parent=1 // pred_fallthru
      _
    %448 = vsyncpa [#allocation3], 1

</llo_original>
